<compile_context>
chip_gen: v7x
topology: tpu7x:2x2x1
jax: 0.10.0
libtpu: 0.0.40
codegen_flags: <defaults>
</compile_context>

<pallas_src>
import jax
import jax.numpy as jnp
from jax import lax
from jax.experimental import pallas as pl
from jax.experimental.pallas import tpu as pltpu

_LANE = 128


def _round_up(n, m):
    return ((n + m - 1) // m) * m


def _sublane(dtype):
    # f32 -> 8, bf16 -> 16, int8/fp8 -> 32
    return 8 * (4 // jnp.dtype(dtype).itemsize)


def _vmem_capacity_bytes():
    try:
        return int(pltpu.get_tpu_info().vmem_capacity_bytes)
    except Exception:
        return 64 * (1 << 20)          # conservative: v7x per-TensorCore VMEM


def _choose_tile_b(B, sub, max_tile=1024):
    """Batch tile: big enough to amortize per-grid-step overhead (~0.35 us),
    small enough to (a) give >=2 grid steps when the batch allows (v7x
    megacore) and (b) bound last-tile padding waste."""
    bp_min = _round_up(max(B, sub), sub)
    tile = min(_round_up(max_tile, sub), bp_min)
    if bp_min >= 2 * sub:                                  # let a 2nd TC help
        tile = min(tile, _round_up(-(-bp_min // 2), sub))
    while tile > sub and _round_up(bp_min, tile) - B > max(sub, B // 8):
        tile -= sub
    return tile, _round_up(bp_min, tile)


def _const_spec(shape):
    """Resident (grid-invariant) operand: constant index_map, single buffer."""
    kwargs = {}
    if hasattr(pl, "Buffered"):
        kwargs["pipeline_mode"] = pl.Buffered(1)
    return pl.BlockSpec(shape, lambda *_: (0,) * len(shape), **kwargs)


# ---------------------------------------------------------------------------
# Kernels
# ---------------------------------------------------------------------------
def _res_resident_kernel(x_ref, w1_ref, b1_ref, w2_ref, b2_ref, o_ref):
    """All L layers' weights VMEM-resident; loop over layers in-kernel.

    x_ref : (tile_b, Fp)          activation tile
    w?_ref: (L, Fp, Fp)           pre-transposed ([in,out]) padded weights
    b?_ref: (L, 1, Fp)            padded biases (f32)
    o_ref : (tile_b, Fp)
    """
    num_layers = w1_ref.shape[0]
    w_dtype = w1_ref.dtype

    acc = x_ref[...].astype(jnp.float32)       # f32 residual accumulator

    def one_layer(l, acc):
        h = jnp.dot(acc.astype(w_dtype), w1_ref[l],
                    preferred_element_type=jnp.float32) + b1_ref[l]
        h = jnp.maximum(h, 0.0)
        y = jnp.dot(h.astype(w_dtype), w2_ref[l],
                    preferred_element_type=jnp.float32) + b2_ref[l]
        return acc + y

    if num_layers <= 8:                         # static unroll: LLO visibility
        for l in range(num_layers):
            acc = one_layer(l, acc)
    else:                                       # bound live ranges for big L
        acc = lax.fori_loop(0, num_layers, one_layer, acc)

    o_ref[...] = acc.astype(o_ref.dtype)


def _res_stream_kernel(x_ref, w1_ref, b1_ref, w2_ref, b2_ref, o_ref, acc_ref):
    """Layer-streaming fallback: grid=(batch_tiles, L), layer axis innermost.
    Per-layer weights are DMA-pipelined; activation carried in acc_ref (f32)."""
    l = pl.program_id(1)
    w_dtype = w1_ref.dtype

    @pl.when(l == 0)
    def _():
        acc_ref[...] = x_ref[...].astype(jnp.float32)

    acc = acc_ref[...]
    h = jnp.dot(acc.astype(w_dtype), w1_ref[0],
                preferred_element_type=jnp.float32) + b1_ref[0]
    h = jnp.maximum(h, 0.0)
    y = jnp.dot(h.astype(w_dtype), w2_ref[0],
                preferred_element_type=jnp.float32) + b2_ref[0]
    acc_ref[...] = acc + y

    @pl.when(l == pl.num_programs(1) - 1)
    def _():
        o_ref[...] = acc_ref[...].astype(o_ref.dtype)


# ---------------------------------------------------------------------------
# Host-side wrappers
# ---------------------------------------------------------------------------
def prepare_residual_params(layers, param_dtype=jnp.bfloat16):
    """One-time parameter prep (hoist out of the hot path).

    layers: list of (w1, b1, w2, b2); w: [F, F] in PyTorch [out, in] layout,
    b: [F].  Weights are transposed to [in, out], zero-padded to
    Fp = round_up(F, 128), cast to param_dtype (default bf16 -> native MXU
    path, half the HBM/VMEM traffic), and stacked along a layer axis.
    Biases stay f32 (added to the f32 accumulator)."""
    F = int(jnp.asarray(layers[0][0]).shape[0])
    Fp = _round_up(F, _LANE)
    pad_w = ((0, Fp - F), (0, Fp - F))

    w1s, b1s, w2s, b2s = [], [], [], []
    for (w1, b1, w2, b2) in layers:
        w1t = jnp.pad(jnp.asarray(w1, jnp.float32).T, pad_w)
        w2t = jnp.pad(jnp.asarray(w2, jnp.float32).T, pad_w)
        if param_dtype is not None:
            w1t = w1t.astype(param_dtype)
            w2t = w2t.astype(param_dtype)
        w1s.append(w1t)
        w2s.append(w2t)
        b1s.append(jnp.pad(jnp.asarray(b1, jnp.float32), (0, Fp - F)).reshape(1, Fp))
        b2s.append(jnp.pad(jnp.asarray(b2, jnp.float32), (0, Fp - F)).reshape(1, Fp))

    return (jnp.stack(w1s), jnp.stack(b1s), jnp.stack(w2s), jnp.stack(b2s), F)


def residual_stack(x, params, *, donate_input=False, force_stream=False):
    """Apply L fused ResidualBlocks to x: [B, F] -> [B, F]."""
    w1s, b1s, w2s, b2s, F = params
    B, Fx = x.shape
    assert Fx == F, "feature dim mismatch"
    L, Fp, _ = w1s.shape
    w_item = jnp.dtype(w1s.dtype).itemsize
    x_item = jnp.dtype(x.dtype).itemsize

    sub = _sublane(x.dtype)
    tile_b, Bp = _choose_tile_b(B, sub)

    cap = _vmem_capacity_bytes()
    budget = max(24 << 20, cap - (8 << 20))     # stay under physical VMEM

    def resident_need(tb):
        return (2 * 2 * tb * Fp * x_item        # double-buffered x in + out
                + 2 * L * Fp * Fp * w_item      # single-buffered weight stacks
                + 2 * L * Fp * 4                # resident biases (f32)
                + 6 * tb * Fp * 4)              # live f32 intermediates

    def stream_need(tb):
        return (2 * 2 * tb * Fp * x_item
                + 2 * 2 * 2 * Fp * Fp * w_item  # double-buffered per-layer w1+w2
                + 2 * 2 * 2 * Fp * 4
                + tb * Fp * 4                   # acc scratch
                + 6 * tb * Fp * 4)

    # Shrink the batch tile if even the streamed path would not fit.
    while tile_b > sub and stream_need(tile_b) > budget:
        tile_b = max(sub, _round_up(tile_b // 2, sub))
    Bp = _round_up(max(B, sub), tile_b)
    grid_b = Bp // tile_b

    use_resident = (not force_stream) and resident_need(tile_b) <= budget
    need = resident_need(tile_b) if use_resident else stream_need(tile_b)
    vmem_limit = int(min(budget, max(32 << 20, int(1.25 * need))))

    xp = x
    if (Bp, Fp) != (B, F):
        xp = jnp.pad(x, ((0, Bp - B), (0, Fp - F)))   # padded lanes/rows stay 0

    if use_resident:
        grid_spec = pltpu.PrefetchScalarGridSpec(
            num_scalar_prefetch=0,
            grid=(grid_b,),
            in_specs=[
                pl.BlockSpec((tile_b, Fp), lambda i: (i, 0)),   # x: batch-tiled
                _const_spec((L, Fp, Fp)),                       # w1 stack resident
                _const_spec((L, 1, Fp)),                        # b1 stack resident
                _const_spec((L, Fp, Fp)),                       # w2 stack resident
                _const_spec((L, 1, Fp)),                        # b2 stack resident
            ],
            out_specs=pl.BlockSpec((tile_b, Fp), lambda i: (i, 0)),
        )
        kernel = _res_resident_kernel
        dims = ("parallel",)
    else:
        grid_spec = pltpu.PrefetchScalarGridSpec(
            num_scalar_prefetch=0,
            grid=(grid_b, L),                                   # layers innermost
            in_specs=[
                pl.BlockSpec((tile_b, Fp), lambda i, l: (i, 0)),
                pl.BlockSpec((1, Fp, Fp), lambda i, l: (l, 0, 0)),
                pl.BlockSpec((1, 1, Fp), lambda i, l: (l, 0, 0)),
                pl.BlockSpec((1, Fp, Fp), lambda i, l: (l, 0, 0)),
                pl.BlockSpec((1, 1, Fp), lambda i, l: (l, 0, 0)),
            ],
            out_specs=pl.BlockSpec((tile_b, Fp), lambda i, l: (i, 0)),
            scratch_shapes=[pltpu.VMEM((tile_b, Fp), jnp.float32)],
        )
        kernel = _res_stream_kernel
        dims = ("parallel", "arbitrary")

    out = pl.pallas_call(
        kernel,
        out_shape=jax.ShapeDtypeStruct((Bp, Fp), x.dtype),
        grid_spec=grid_spec,
        compiler_params=pltpu.CompilerParams(
            dimension_semantics=dims,
            vmem_limit_bytes=vmem_limit,
        ),
        input_output_aliases=({0: 0} if donate_input else {}),
    )(xp, w1s, b1s, w2s, b2s)

    if (Bp, Fp) != (B, F):
        out = out[:B, :F]
    return out


def residual_block(x, w1, b1, w2, b2, param_dtype=jnp.float32):
    """Single-ResidualBlock convenience API matching the PyTorch module.
    (For repeated calls, hoist prepare_residual_params out of the hot path.)"""
    return residual_stack(x, prepare_residual_params([(w1, b1, w2, b2)], param_dtype))


if __name__ == "__main__":
    B, F = 4, 32  # batch=4, size=32 (nn.Linear(size, size) twice)

    key = jax.random.PRNGKey(0)
    kx, kw1, kb1, kw2, kb2 = jax.random.split(key, 5)

    bound = 1.0 / jnp.sqrt(jnp.float32(F))
    x = jax.random.normal(kx, (B, F), dtype=jnp.float32)
    w1 = jax.random.uniform(kw1, (F, F), jnp.float32, -bound, bound)  # [out, in]
    b1 = jax.random.uniform(kb1, (F,), jnp.float32, -bound, bound)
    w2 = jax.random.uniform(kw2, (F, F), jnp.float32, -bound, bound)  # [out, in]
    b2 = jax.random.uniform(kb2, (F,), jnp.float32, -bound, bound)

    ref = x + (jnp.maximum(x @ w1.T + b1, 0.0) @ w2.T + b2)

    # --- single ResidualBlock, f32 params (exact module numerics) ---
    params_f32 = prepare_residual_params([(w1, b1, w2, b2)], param_dtype=jnp.float32)
    out = jax.block_until_ready(residual_stack(x, params_f32))
    assert out.shape == (B, F)
    assert jnp.allclose(out, ref, atol=1e-5, rtol=1e-5)

    # --- single ResidualBlock, default bf16 weights (perf path) ---
    params_bf16 = prepare_residual_params([(w1, b1, w2, b2)])
    out_bf = jax.block_until_ready(residual_stack(x, params_bf16))
    assert jnp.allclose(out_bf, ref, atol=3e-2, rtol=3e-2)

    # --- fused stack of 3 ResidualBlocks: resident-weight and streamed paths ---
    keys = jax.random.split(jax.random.PRNGKey(1), 12)
    layers = []
    for i in range(3):
        lw1 = jax.random.uniform(keys[4 * i + 0], (F, F), jnp.float32, -bound, bound)
        lb1 = jax.random.uniform(keys[4 * i + 1], (F,), jnp.float32, -bound, bound)
        lw2 = jax.random.uniform(keys[4 * i + 2], (F, F), jnp.float32, -bound, bound)
        lb2 = jax.random.uniform(keys[4 * i + 3], (F,), jnp.float32, -bound, bound)
        layers.append((lw1, lb1, lw2, lb2))

    ref3 = x
    for (lw1, lb1, lw2, lb2) in layers:
        ref3 = ref3 + (jnp.maximum(ref3 @ lw1.T + lb1, 0.0) @ lw2.T + lb2)

    params3 = prepare_residual_params(layers, param_dtype=jnp.float32)
    out3 = jax.block_until_ready(residual_stack(x, params3))
    assert out3.shape == (B, F)
    assert jnp.allclose(out3, ref3, atol=1e-4, rtol=1e-4)

    out3s = jax.block_until_ready(residual_stack(x, params3, force_stream=True))
    assert jnp.allclose(out3s, ref3, atol=1e-4, rtol=1e-4)

    print("KERNEL_OK")
</pallas_src>

<mosaic_0001>
module attributes {stable_mosaic.version = 11 : i64} {
  func.func @_res_resident_kernel(%arg0: i32, %arg1: memref<8x128xf32, #tpu.memory_space<vmem>>, %arg2: memref<1x128x128xf32, #tpu.memory_space<vmem>>, %arg3: memref<1x1x128xf32, #tpu.memory_space<vmem>>, %arg4: memref<1x128x128xf32, #tpu.memory_space<vmem>>, %arg5: memref<1x1x128xf32, #tpu.memory_space<vmem>>, %arg6: memref<8x128xf32, #tpu.memory_space<vmem>>) attributes {dimension_semantics = [#tpu.dimension_semantics<parallel>], iteration_bounds = array<i64: 1>, scalar_prefetch = 0 : i64, scratch_operands = 0 : i64, tpu.core_type = #tpu.core_type<tc>, window_params = [{transform_indices = @transform_0, window_bounds = array<i64: 8, 128>}, {pipeline_mode = #tpu.pipeline_mode<synchronous>, transform_indices = @transform_1, window_bounds = array<i64: 1, 128, 128>}, {pipeline_mode = #tpu.pipeline_mode<synchronous>, transform_indices = @transform_2, window_bounds = array<i64: 1, 1, 128>}, {pipeline_mode = #tpu.pipeline_mode<synchronous>, transform_indices = @transform_3, window_bounds = array<i64: 1, 128, 128>}, {pipeline_mode = #tpu.pipeline_mode<synchronous>, transform_indices = @transform_4, window_bounds = array<i64: 1, 1, 128>}, {transform_indices = @transform_5, window_bounds = array<i64: 8, 128>}]} {
    %c0 = arith.constant 0 : index
    %c0_0 = arith.constant 0 : index
    %0 = vector.load %arg1[%c0, %c0_0] : memref<8x128xf32, #tpu.memory_space<vmem>>, vector<8x128xf32>
    %c0_1 = arith.constant 0 : index
    %c0_2 = arith.constant 0 : index
    %c0_3 = arith.constant 0 : index
    %1 = vector.load %arg2[%c0_1, %c0_2, %c0_3] : memref<1x128x128xf32, #tpu.memory_space<vmem>>, vector<1x128x128xf32>
    %2 = vector.shape_cast %1 : vector<1x128x128xf32> to vector<128x128xf32>
    %cst = arith.constant dense<0.000000e+00> : vector<8x128xf32>
    %3 = tpu.matmul %0, %2, %cst {dimension_numbers = #tpu.dot_dimension_numbers<[1], [0], [0], [1], [0, 0, 1, 1], [], []>} : vector<8x128xf32>, vector<128x128xf32>, vector<8x128xf32> -> vector<8x128xf32>
    %c0_4 = arith.constant 0 : index
    %c0_5 = arith.constant 0 : index
    %c0_6 = arith.constant 0 : index
    %4 = vector.load %arg3[%c0_4, %c0_5, %c0_6] : memref<1x1x128xf32, #tpu.memory_space<vmem>>, vector<1x1x128xf32>
    %5 = vector.shape_cast %4 : vector<1x1x128xf32> to vector<1x128xf32>
    %6 = vector.broadcast %5 : vector<1x128xf32> to vector<8x128xf32>
    %7 = arith.addf %3, %6 : vector<8x128xf32>
    %cst_7 = arith.constant 0.000000e+00 : f32
    %8 = vector.broadcast %cst_7 : f32 to vector<8x128xf32>
    %9 = arith.maximumf %7, %8 : vector<8x128xf32>
    %c0_8 = arith.constant 0 : index
    %c0_9 = arith.constant 0 : index
    %c0_10 = arith.constant 0 : index
    %10 = vector.load %arg4[%c0_8, %c0_9, %c0_10] : memref<1x128x128xf32, #tpu.memory_space<vmem>>, vector<1x128x128xf32>
    %11 = vector.shape_cast %10 : vector<1x128x128xf32> to vector<128x128xf32>
    %cst_11 = arith.constant dense<0.000000e+00> : vector<8x128xf32>
    %12 = tpu.matmul %9, %11, %cst_11 {dimension_numbers = #tpu.dot_dimension_numbers<[1], [0], [0], [1], [0, 0, 1, 1], [], []>} : vector<8x128xf32>, vector<128x128xf32>, vector<8x128xf32> -> vector<8x128xf32>
    %c0_12 = arith.constant 0 : index
    %c0_13 = arith.constant 0 : index
    %c0_14 = arith.constant 0 : index
    %13 = vector.load %arg5[%c0_12, %c0_13, %c0_14] : memref<1x1x128xf32, #tpu.memory_space<vmem>>, vector<1x1x128xf32>
    %14 = vector.shape_cast %13 : vector<1x1x128xf32> to vector<1x128xf32>
    %15 = vector.broadcast %14 : vector<1x128xf32> to vector<8x128xf32>
    %16 = arith.addf %12, %15 : vector<8x128xf32>
    %17 = arith.addf %0, %16 : vector<8x128xf32>
    %c0_15 = arith.constant 0 : index
    %c0_16 = arith.constant 0 : index
    %18 = vector.load %arg6[%c0_15, %c0_16] : memref<8x128xf32, #tpu.memory_space<vmem>>, vector<8x128xf32>
    tpu.vector_store %arg6[%c0_15, %c0_16], %17 {strides = array<i32>} : memref<8x128xf32, #tpu.memory_space<vmem>>, vector<8x128xf32>,
    return
  }
  func.func @transform_0(%arg0: i32) -> (i32, i32) {
    %c0_i32 = arith.constant 0 : i32
    %c0_i32_0 = arith.constant 0 : i32
    return %arg0, %c0_i32 : i32, i32
  }
  func.func @transform_1(%arg0: i32) -> (i32, i32, i32) {
    %c0_i32 = arith.constant 0 : i32
    %c0_i32_0 = arith.constant 0 : i32
    %c0_i32_1 = arith.constant 0 : i32
    %c0_i32_2 = arith.constant 0 : i32
    return %c0_i32, %c0_i32_0, %c0_i32_1 : i32, i32, i32
  }
  func.func @transform_2(%arg0: i32) -> (i32, i32, i32) {
    %c0_i32 = arith.constant 0 : i32
    %c0_i32_0 = arith.constant 0 : i32
    %c0_i32_1 = arith.constant 0 : i32
    %c0_i32_2 = arith.constant 0 : i32
    return %c0_i32, %c0_i32_0, %c0_i32_1 : i32, i32, i32
  }
  func.func @transform_3(%arg0: i32) -> (i32, i32, i32) {
    %c0_i32 = arith.constant 0 : i32
    %c0_i32_0 = arith.constant 0 : i32
    %c0_i32_1 = arith.constant 0 : i32
    %c0_i32_2 = arith.constant 0 : i32
    return %c0_i32, %c0_i32_0, %c0_i32_1 : i32, i32, i32
  }
  func.func @transform_4(%arg0: i32) -> (i32, i32, i32) {
    %c0_i32 = arith.constant 0 : i32
    %c0_i32_0 = arith.constant 0 : i32
    %c0_i32_1 = arith.constant 0 : i32
    %c0_i32_2 = arith.constant 0 : i32
    return %c0_i32, %c0_i32_0, %c0_i32_1 : i32, i32, i32
  }
  func.func @transform_5(%arg0: i32) -> (i32, i32) {
    %c0_i32 = arith.constant 0 : i32
    %c0_i32_0 = arith.constant 0 : i32
    return %arg0, %c0_i32 : i32, i32
  }
}

</mosaic_0001>

<llo_original>
// kernel: tpu_custom_call.1
$region0: #{tpu_custom_call.1}
  #allocation0 [shape = 'u32[]', space=smem, size = 0x4, offset = 0x4, fixed_abs, tag = 'smem constant byte address 0x4 - core index']
  #allocation1 [shape = 'u32[144,128]{1,0:T(1,128)}', space=vmem, size = 0x12000, scoped, tag = 'internal scratch']
  %s0 = inlined_call_operand.hbm [shape: f32[8,128], index: 0, kind: input, shape index: {}]
  %s1 = inlined_call_operand.hbm [shape: f32[1,128,128], index: 1, kind: input, shape index: {}]
  %s2 = inlined_call_operand.vmem [shape: f32[1,1,128], index: 2, kind: input, shape index: {}]
  %s3 = inlined_call_operand.hbm [shape: f32[1,128,128], index: 3, kind: input, shape index: {}]
  %s4 = inlined_call_operand.vmem [shape: f32[1,1,128], index: 4, kind: input, shape index: {}]
  %s5 = inlined_call_operand.hbm [shape: f32[8,128], index: 5, kind: output, shape index: {}]
  %s6 = sld [smem:[#allocation0]]
  $region42: #{tpu_custom_call.1} parent=0
    _
  %s8 = ssub.s32 1, %s6
  %s9 = scalar_select 0, %s8, %s6
  $region1: #{tpu_custom_call.1} parent=0
    #allocation2 [shape = 'u8[4096]{0}', space=vmem, size = 0x1000, scoped, tag = 'input window, operand 0, single buffered']
    #allocation3 [shape = 's32[1]{0}', space=sflag, size = 0x4, scoped, tag = 'scoped memory for tpu_custom_call.1']
    #allocation4 [shape = 's32[1]{0}', space=sflag, size = 0x4, scoped, tag = 'scoped memory for tpu_custom_call.1']
    #allocation5 [shape = 'u8[65536]{0}', space=vmem, size = 0x10000, scoped, tag = 'input window, operand 1, single buffered']
    #allocation6 [shape = 's32[1]{0}', space=sflag, size = 0x4, scoped, tag = 'scoped memory for tpu_custom_call.1']
    #allocation7 [shape = 'u8[65536]{0}', space=vmem, size = 0x10000, scoped, tag = 'input window, operand 3, single buffered']
    #allocation8 [shape = 'u8[4096]{0}', space=vmem, size = 0x1000, scoped, tag = 'output window, operand 0, single buffered']
    %10 = vsyncpa [#allocation3], 0
    %11 = vsyncpa [#allocation6], 0
    %12 = vsyncpa [#allocation4], 0
    // Predicated region
    $region2: #{tpu_custom_call.1} parent=1 // pred_check
      _
    $region3: #{tpu_custom_call.1} parent=1 // pred_check_branch
      %14 = sbr.rel (0) target = $region5
    $region4: #{tpu_custom_call.1} parent=1 // pred_region
      %s16 = ssub.s32 128, 128
      %17 = vsyncadd [#allocation3], %s16
      %s19 = sshll.u32 [#allocation2], 4
      %s20 = int_to_ptr.vmem [resolvable:$true] %s19
      %22 = dma.hbm_to_vmem [thread:$0]  %s0, 128, %s20, [#allocation3]
    $region5: #{tpu_custom_call.1} parent=1 // pred_fallthru
      _
    // Predicated region
    $region6: #{tpu_custom_call.1} parent=1 // pred_check
      _
    $region7: #{tpu_custom_call.1} parent=1 // pred_check_branch
      %24 = sbr.rel (0) target = $region9
    $region8: #{tpu_custom_call.1} parent=1 // pred_region
      %s26 = ssub.s32 2048, 2048
      %27 = vsyncadd [#allocation6], %s26
      %s28 = sshll.u32 [#allocation5], 4
      %s29 = int_to_ptr.vmem [resolvable:$true] %s28
      %34 = dma.hbm_to_vmem [thread:$0]  %s1, 2048, %s29, [#allocation6], 128, 128, 8
    $region9: #{tpu_custom_call.1} parent=1 // pred_fallthru
      _
    // Predicated region
    $region10: #{tpu_custom_call.1} parent=1 // pred_check
      _
    $region11: #{tpu_custom_call.1} parent=1 // pred_check_branch
      %36 = sbr.rel (0) target = $region13
    $region12: #{tpu_custom_call.1} parent=1 // pred_region
      _
    $region13: #{tpu_custom_call.1} parent=1 // pred_fallthru
      _
    // Predicated region
    $region14: #{tpu_custom_call.1} parent=1 // pred_check
      _
    $region15: #{tpu_custom_call.1} parent=1 // pred_check_branch
      %38 = sbr.rel (0) target = $region17
    $region16: #{tpu_custom_call.1} parent=1 // pred_region
      %s40 = ssub.s32 2048, 2048
      %41 = vsyncadd [#allocation6], %s40
      %s42 = sshll.u32 [#allocation7], 4
      %s43 = int_to_ptr.vmem [resolvable:$true] %s42
      %48 = dma.hbm_to_vmem [thread:$0]  %s3, 2048, %s43, [#allocation6], 128, 128, 8
    $region17: #{tpu_custom_call.1} parent=1 // pred_fallthru
      _
    // Predicated region
    $region18: #{tpu_custom_call.1} parent=1 // pred_check
      _
    $region19: #{tpu_custom_call.1} parent=1 // pred_check_branch
      %50 = sbr.rel (0) target = $region21
    $region20: #{tpu_custom_call.1} parent=1 // pred_region
      _
    $region21: #{tpu_custom_call.1} parent=1 // pred_fallthru
      _
    // Predicated region
    $region22: #{tpu_custom_call.1} parent=1 // pred_check
      _
    $region23: #{tpu_custom_call.1} parent=1 // pred_check_branch
      %52 = sbr.rel (0) target = $region25
    $region24: #{tpu_custom_call.1} parent=1 // pred_region
      %53 = dma.done [#allocation3], 128
    $region25: #{tpu_custom_call.1} parent=1 // pred_fallthru
      _
    // Predicated region
    $region26: #{tpu_custom_call.1} parent=1 // pred_check
      _
    $region27: #{tpu_custom_call.1} parent=1 // pred_check_branch
      %55 = sbr.rel (0) target = $region29
    $region28: #{tpu_custom_call.1} parent=1 // pred_region
      %56 = dma.done [#allocation6], 2048
    $region29: #{tpu_custom_call.1} parent=1 // pred_fallthru
      _
    // Predicated region
    $region30: #{tpu_custom_call.1} parent=1 // pred_check
      _
    $region31: #{tpu_custom_call.1} parent=1 // pred_check_branch
      %58 = sbr.rel (0) target = $region33
    $region32: #{tpu_custom_call.1} parent=1 // pred_region
      %59 = dma.done [#allocation6], 2048
    $region33: #{tpu_custom_call.1} parent=1 // pred_fallthru
      _
    %v60 = vld [vmem:[#allocation2] sm:$0xff]
    %v61 = vld [vmem:[#allocation5] sm:$0xff]
    %v62 = vld [vmem:[#allocation5 + $0x8] sm:$0xff]
    %v63 = vld [vmem:[#allocation5 + $0x10] sm:$0xff]
    %v64 = vld [vmem:[#allocation5 + $0x18] sm:$0xff]
    %v65 = vld [vmem:[#allocation5 + $0x20] sm:$0xff]
    %v66 = vld [vmem:[#allocation5 + $0x28] sm:$0xff]
    %v67 = vld [vmem:[#allocation5 + $0x30] sm:$0xff]
    %v68 = vld [vmem:[#allocation5 + $0x38] sm:$0xff]
    %v69 = vld [vmem:[#allocation5 + $0x40] sm:$0xff]
    %v70 = vld [vmem:[#allocation5 + $0x48] sm:$0xff]
    %v71 = vld [vmem:[#allocation5 + $0x50] sm:$0xff]
    %v72 = vld [vmem:[#allocation5 + $0x58] sm:$0xff]
    %v73 = vld [vmem:[#allocation5 + $0x60] sm:$0xff]
    %v74 = vld [vmem:[#allocation5 + $0x68] sm:$0xff]
    %v75 = vld [vmem:[#allocation5 + $0x70] sm:$0xff]
    %v76 = vld [vmem:[#allocation5 + $0x78] sm:$0xff]
    %v77 = vld [vmem:[%s2] sm:$0x1]
    %v79 = vlaneseq
    %v80 = vshrl.u32 %v79, 7
    %v81 = vsub.s32 0, %v80
    %v82 = vrot.slane %v77, %v81
    %84 = vmatprep.subr.mxu0 0.0
    %85 = vmatpush1.msra.mxu0 %v61
    %86 = vmatprep.subr.mxu0 0.0
    %87 = vmatpush1.msra.mxu0 %v62
    %88 = vmatprep.subr.mxu0 0.0
    %89 = vmatpush1.msra.mxu0 %v63
    %90 = vmatprep.subr.mxu0 0.0
    %91 = vmatpush1.msra.mxu0 %v64
    %92 = vmatprep.subr.mxu0 0.0
    %93 = vmatpush1.msra.mxu0 %v65
    %94 = vmatprep.subr.mxu0 0.0
    %95 = vmatpush1.msra.mxu0 %v66
    %96 = vmatprep.subr.mxu0 0.0
    %97 = vmatpush1.msra.mxu0 %v67
    %98 = vmatprep.subr.mxu0 0.0
    %99 = vmatpush1.msra.mxu0 %v68
    %100 = vmatprep.subr.mxu0 0.0
    %101 = vmatpush1.msra.mxu0 %v69
    %102 = vmatprep.subr.mxu0 0.0
    %103 = vmatpush1.msra.mxu0 %v70
    %104 = vmatprep.subr.mxu0 0.0
    %105 = vmatpush1.msra.mxu0 %v71
    %106 = vmatprep.subr.mxu0 0.0
    %107 = vmatpush1.msra.mxu0 %v72
    %108 = vmatprep.subr.mxu0 0.0
    %109 = vmatpush1.msra.mxu0 %v73
    %110 = vmatprep.subr.mxu0 0.0
    %111 = vmatpush1.msra.mxu0 %v74
    %112 = vmatprep.subr.mxu0 0.0
    %113 = vmatpush1.msra.mxu0 %v75
    %114 = vmatprep.subr.mxu0 0.0
    %115 = vmatpush1.msra.mxu0 %v76
    %116 = vmatprep.subr.mxu0 0.0
    %117 = vmatpush1.msra.mxu0 0.0
    %118 = vmatprep.subr.mxu0 0.0
    %119 = vmatpush1.msra.mxu0 0.0
    %120 = vmatprep.subr.mxu0 0.0
    %121 = vmatpush1.msra.mxu0 0.0
    %122 = vmatprep.subr.mxu0 0.0
    %123 = vmatpush1.msra.mxu0 0.0
    %124 = vmatprep.subr.mxu0 0.0
    %125 = vmatpush1.msra.mxu0 0.0
    %126 = vmatprep.subr.mxu0 0.0
    %127 = vmatpush1.msra.mxu0 0.0
    %128 = vmatprep.subr.mxu0 0.0
    %129 = vmatpush1.msra.mxu0 0.0
    %130 = vmatprep.subr.mxu0 0.0
    %131 = vmatpush1.msra.mxu0 0.0
    %132 = vmatprep.subr.mxu0 0.0
    %133 = vmatpush1.msra.mxu0 0.0
    %134 = vmatprep.subr.mxu0 0.0
    %135 = vmatpush1.msra.mxu0 0.0
    %136 = vmatprep.subr.mxu0 0.0
    %137 = vmatpush1.msra.mxu0 0.0
    %138 = vmatprep.subr.mxu0 0.0
    %139 = vmatpush1.msra.mxu0 0.0
    %140 = vmatprep.subr.mxu0 0.0
    %141 = vmatpush1.msra.mxu0 0.0
    %142 = vmatprep.subr.mxu0 0.0
    %143 = vmatpush1.msra.mxu0 0.0
    %144 = vmatprep.subr.mxu0 0.0
    %145 = vmatpush1.msra.mxu0 0.0
    %146 = vmatprep.subr.mxu0 0.0
    %147 = vmatpush1.msra.mxu0 0.0
    %148 = vmatprep.mubr.f32.mxu0 0.0
    %149 = vmatmul.mubr.f32.gmra.mrb[0].mxu0 %v60
    %v150 = vpop.f32.mrb[0].mxu0
    %v151 = vadd.f32 %v82, %v150
    %v152 = vpop.f32.mrb[0].mxu0
    %153 = vdwg.mxu0
    %v154 = vmax.f32 %v151, 0.0
    %v155 = vld [vmem:[#allocation7] sm:$0xff]
    %v156 = vld [vmem:[#allocation7 + $0x8] sm:$0xff]
    %v157 = vld [vmem:[#allocation7 + $0x10] sm:$0xff]
    %v158 = vld [vmem:[#allocation7 + $0x18] sm:$0xff]
    %v159 = vld [vmem:[#allocation7 + $0x20] sm:$0xff]
    %v160 = vld [vmem:[#allocation7 + $0x28] sm:$0xff]
    %v161 = vld [vmem:[#allocation7 + $0x30] sm:$0xff]
    %v162 = vld [vmem:[#allocation7 + $0x38] sm:$0xff]
    %v163 = vld [vmem:[#allocation7 + $0x40] sm:$0xff]
    %v164 = vld [vmem:[#allocation7 + $0x48] sm:$0xff]
    %v165 = vld [vmem:[#allocation7 + $0x50] sm:$0xff]
    %v166 = vld [vmem:[#allocation7 + $0x58] sm:$0xff]
    %v167 = vld [vmem:[#allocation7 + $0x60] sm:$0xff]
    %v168 = vld [vmem:[#allocation7 + $0x68] sm:$0xff]
    %v169 = vld [vmem:[#allocation7 + $0x70] sm:$0xff]
    %v170 = vld [vmem:[#allocation7 + $0x78] sm:$0xff]
    %v171 = vld [vmem:[%s4] sm:$0x1]
    %v173 = vlaneseq
    %v174 = vshrl.u32 %v173, 7
    %v175 = vsub.s32 0, %v174
    %v176 = vrot.slane %v171, %v175
    %178 = vmatprep.subr.mxu0 0.0
    %179 = vmatpush1.msra.mxu0 %v155
    %180 = vmatprep.subr.mxu0 0.0
    %181 = vmatpush1.msra.mxu0 %v156
    %182 = vmatprep.subr.mxu0 0.0
    %183 = vmatpush1.msra.mxu0 %v157
    %184 = vmatprep.subr.mxu0 0.0
    %185 = vmatpush1.msra.mxu0 %v158
    %186 = vmatprep.subr.mxu0 0.0
    %187 = vmatpush1.msra.mxu0 %v159
    %188 = vmatprep.subr.mxu0 0.0
    %189 = vmatpush1.msra.mxu0 %v160
    %190 = vmatprep.subr.mxu0 0.0
    %191 = vmatpush1.msra.mxu0 %v161
    %192 = vmatprep.subr.mxu0 0.0
    %193 = vmatpush1.msra.mxu0 %v162
    %194 = vmatprep.subr.mxu0 0.0
    %195 = vmatpush1.msra.mxu0 %v163
    %196 = vmatprep.subr.mxu0 0.0
    %197 = vmatpush1.msra.mxu0 %v164
    %198 = vmatprep.subr.mxu0 0.0
    %199 = vmatpush1.msra.mxu0 %v165
    %200 = vmatprep.subr.mxu0 0.0
    %201 = vmatpush1.msra.mxu0 %v166
    %202 = vmatprep.subr.mxu0 0.0
    %203 = vmatpush1.msra.mxu0 %v167
    %204 = vmatprep.subr.mxu0 0.0
    %205 = vmatpush1.msra.mxu0 %v168
    %206 = vmatprep.subr.mxu0 0.0
    %207 = vmatpush1.msra.mxu0 %v169
    %208 = vmatprep.subr.mxu0 0.0
    %209 = vmatpush1.msra.mxu0 %v170
    %210 = vmatprep.subr.mxu0 0.0
    %211 = vmatpush1.msra.mxu0 0.0
    %212 = vmatprep.subr.mxu0 0.0
    %213 = vmatpush1.msra.mxu0 0.0
    %214 = vmatprep.subr.mxu0 0.0
    %215 = vmatpush1.msra.mxu0 0.0
    %216 = vmatprep.subr.mxu0 0.0
    %217 = vmatpush1.msra.mxu0 0.0
    %218 = vmatprep.subr.mxu0 0.0
    %219 = vmatpush1.msra.mxu0 0.0
    %220 = vmatprep.subr.mxu0 0.0
    %221 = vmatpush1.msra.mxu0 0.0
    %222 = vmatprep.subr.mxu0 0.0
    %223 = vmatpush1.msra.mxu0 0.0
    %224 = vmatprep.subr.mxu0 0.0
    %225 = vmatpush1.msra.mxu0 0.0
    %226 = vmatprep.subr.mxu0 0.0
    %227 = vmatpush1.msra.mxu0 0.0
    %228 = vmatprep.subr.mxu0 0.0
    %229 = vmatpush1.msra.mxu0 0.0
    %230 = vmatprep.subr.mxu0 0.0
    %231 = vmatpush1.msra.mxu0 0.0
    %232 = vmatprep.subr.mxu0 0.0
    %233 = vmatpush1.msra.mxu0 0.0
    %234 = vmatprep.subr.mxu0 0.0
    %235 = vmatpush1.msra.mxu0 0.0
    %236 = vmatprep.subr.mxu0 0.0
    %237 = vmatpush1.msra.mxu0 0.0
    %238 = vmatprep.subr.mxu0 0.0
    %239 = vmatpush1.msra.mxu0 0.0
    %240 = vmatprep.subr.mxu0 0.0
    %241 = vmatpush1.msra.mxu0 0.0
    %242 = vmatprep.mubr.f32.mxu0 0.0
    %243 = vmatmul.mubr.f32.gmra.mrb[0].mxu0 %v154
    %v244 = vpop.f32.mrb[0].mxu0
    %v245 = vadd.f32 %v176, %v244
    %v246 = vpop.f32.mrb[0].mxu0
    %247 = vdwg.mxu0
    %v248 = vadd.f32 %v60, %v245
    %249 = vst [vmem:[#allocation8] sm:$0xff] %v248
    // Predicated region
    $region34: #{tpu_custom_call.1} parent=1 // pred_check
      _
    $region35: #{tpu_custom_call.1} parent=1 // pred_check_branch
      %251 = sbr.rel (0) target = $region37
    $region36: #{tpu_custom_call.1} parent=1 // pred_region
      %s253 = ssub.s32 128, 128
      %254 = vsyncadd [#allocation4], %s253
      %s256 = sshll.u32 [#allocation8], 4
      %s257 = int_to_ptr.vmem [resolvable:$true] %s256
      %259 = dma.vmem_to_hbm [thread:$0]  %s257, 128, %s5, [#allocation4]
    $region37: #{tpu_custom_call.1} parent=1 // pred_fallthru
      _
    // Predicated region
    $region38: #{tpu_custom_call.1} parent=1 // pred_check
      _
    $region39: #{tpu_custom_call.1} parent=1 // pred_check_branch
      %261 = sbr.rel (0) target = $region41
    $region40: #{tpu_custom_call.1} parent=1 // pred_region
      %262 = dma.done [#allocation4], 128
    $region41: #{tpu_custom_call.1} parent=1 // pred_fallthru
      _
    %263 = vsyncpa [#allocation3], 1
    %264 = vsyncpa [#allocation6], 1
    %265 = vsyncpa [#allocation4], 1

</llo_original>
